<compile_context>
chip_gen: v5e
topology: v5e:2x2
jax: 0.10.0
libtpu: 0.0.40
codegen_flags: <defaults>
</compile_context>

<pallas_src>
import functools

import jax
import jax.numpy as jnp
from jax import lax
from jax.experimental import pallas as pl
from jax.experimental.pallas import tpu as pltpu


# ------------------------------ Pallas kernel -------------------------------
def _eblock_kernel(x_ref, m_ref, b_ref, out_ref, *, H, WC, num_res,
                   compute_dtype):
    """Whole EBlock for one batch element.

    x_ref   : (1, H, WC)              lane-dense activation (WC = W*C)
    m_ref   : (2*num_res, 3, WC, WC)  folded conv matrices (per conv, per dy)
    b_ref   : (2*num_res, 1, WC)      W-tiled biases
    out_ref : (1, H, WC)
    """
    f32 = jnp.float32
    x = x_ref[0].astype(f32)                       # (H, WC), stays in registers
    zrow = jnp.zeros((1, WC), f32)                 # hoisted: shared zero pad row

    def conv(v, idx):
        """3x3 'same' conv as 3 K=WC MXU dots: sum_dy rowshift(v, dy-1) @ M[dy]."""
        up = jnp.concatenate([zrow, v[:-1, :]], axis=0)   # up[h] = v[h-1], up[0]=0
        dn = jnp.concatenate([v[1:, :], zrow], axis=0)    # dn[h] = v[h+1], dn[H-1]=0
        acc = jnp.dot(up.astype(compute_dtype), m_ref[idx, 0, :, :],
                      preferred_element_type=f32)
        acc = acc + jnp.dot(v.astype(compute_dtype), m_ref[idx, 1, :, :],
                            preferred_element_type=f32)
        acc = acc + jnp.dot(dn.astype(compute_dtype), m_ref[idx, 2, :, :],
                            preferred_element_type=f32)
        return acc + b_ref[idx].astype(f32)               # (H, WC), f32

    for r in range(num_res):
        y = jnp.maximum(conv(x, 2 * r), 0.0)       # conv1 + bias + ReLU
        x = conv(y, 2 * r + 1) + x                 # conv2 + bias + residual
    out_ref[0] = x.astype(out_ref.dtype)


# ------------------------------ host-side fold ------------------------------
def _fold_conv_params(w_hwio, b, W, weight_dtype):
    """Fold a 3x3 conv into 3 block-banded (W*C, W*C) matrices + tiled bias.

    M[dy][(w+dx-1)*C + ci, w*C + co] = w_hwio[dy, dx, ci, co]  (band clipped at
    the W edges, which implements the zero padding along W for free).
    """
    mats = []
    for dy in range(3):
        m = sum(jnp.kron(jnp.eye(W, k=1 - dx, dtype=jnp.float32),
                         w_hwio[dy, dx].astype(jnp.float32))
                for dx in range(3))
        mats.append(m)
    M = jnp.stack(mats).astype(weight_dtype)                     # (3, WC, WC)
    bfold = jnp.tile(b.astype(jnp.float32), W).reshape(1, -1)    # (1, WC)
    return M, bfold


# --------------------------------- wrappers ----------------------------------
def eblock_forward_nhwc(x_nhwc, params, *, compute_dtype=jnp.float32):
    """EBlock forward, NHWC in / NHWC out (preferred: no layout transposes)."""
    N, H, W, C = x_nhwc.shape
    WC = W * C
    num_res = len(params)
    # TODO(synk): for very large W*C the folded (W*C)^2 weight matrices grow
    # quadratically; a W-tiled variant of the fold would be needed there.

    Ms, bs = [], []
    for (w1, b1, w2, b2) in params:
        m1, bf1 = _fold_conv_params(w1, b1, W, compute_dtype)
        m2, bf2 = _fold_conv_params(w2, b2, W, compute_dtype)
        Ms += [m1, m2]
        bs += [bf1, bf2]
    M_all = jnp.stack(Ms)                    # (2*num_res, 3, WC, WC)
    b_all = jnp.stack(bs)                    # (2*num_res, 1, WC)

    x_fold = x_nhwc.reshape(N, H, WC)        # lane-dense: W*C on the lane axis

    kernel = functools.partial(_eblock_kernel, H=H, WC=WC, num_res=num_res,
                               compute_dtype=compute_dtype)
    out = pl.pallas_call(
        kernel,
        out_shape=jax.ShapeDtypeStruct((N, H, WC), x_nhwc.dtype),
        grid_spec=pltpu.PrefetchScalarGridSpec(
            num_scalar_prefetch=0,
            grid=(N,),
            in_specs=[
                pl.BlockSpec((1, H, WC), lambda n: (n, 0, 0)),
                pl.BlockSpec((2 * num_res, 3, WC, WC), lambda n: (0, 0, 0, 0)),
                pl.BlockSpec((2 * num_res, 1, WC), lambda n: (0, 0, 0)),
            ],
            out_specs=pl.BlockSpec((1, H, WC), lambda n: (n, 0, 0)),
        ),
        compiler_params=pltpu.CompilerParams(
            dimension_semantics=("parallel",)),
    )(x_fold, M_all, b_all)
    return out.reshape(N, H, W, C)


def eblock_forward(x_nchw, params, *, compute_dtype=jnp.float32):
    """NCHW in/out for parity with the PyTorch module."""
    x = jnp.transpose(x_nchw, (0, 2, 3, 1))
    x = eblock_forward_nhwc(x, params, compute_dtype=compute_dtype)
    return jnp.transpose(x, (0, 3, 1, 2))


def init_eblock_params(key, channels, num_res):
    """PyTorch-Conv2d-style uniform fan-in init. Weights stored HWIO (3,3,C,C)."""
    params = []
    fan_in = 9 * channels
    scale = 1.0 / float(fan_in) ** 0.5
    for _ in range(num_res):
        k1, k2, k3, k4, key = jax.random.split(key, 5)
        w1 = jax.random.uniform(k1, (3, 3, channels, channels), jnp.float32, -scale, scale)
        b1 = jax.random.uniform(k2, (channels,), jnp.float32, -scale, scale)
        w2 = jax.random.uniform(k3, (3, 3, channels, channels), jnp.float32, -scale, scale)
        b2 = jax.random.uniform(k4, (channels,), jnp.float32, -scale, scale)
        params.append((w1, b1, w2, b2))
    return params


# ----------------- pure-JAX reference (for correctness check) ----------------
def _ref_conv(x_nhwc, w_hwio, b):
    y = lax.conv_general_dilated(x_nhwc, w_hwio, (1, 1), "SAME",
                                 dimension_numbers=("NHWC", "HWIO", "NHWC"))
    return y + b.reshape(1, 1, 1, -1)


def eblock_ref(x_nchw, params):
    x = jnp.transpose(x_nchw, (0, 2, 3, 1))
    for (w1, b1, w2, b2) in params:
        y = jnp.maximum(_ref_conv(x, w1, b1), 0.0)
        x = _ref_conv(y, w2, b2) + x
    return jnp.transpose(x, (0, 3, 1, 2))


if __name__ == "__main__":
    key = jax.random.PRNGKey(0)
    kx, kp = jax.random.split(key)

    N, C, H, W = 2, 8, 16, 16           # NCHW, matching the PyTorch module input
    num_res = 2                          # EBlock(out_channel=8, num_res=2)

    x = jax.random.normal(kx, (N, C, H, W), jnp.float32)
    params = init_eblock_params(kp, C, num_res)

    out = jax.block_until_ready(jax.jit(eblock_forward)(x, params))
    ref = eblock_ref(x, params)

    assert out.shape == (N, C, H, W)
    assert jnp.allclose(out, ref, atol=2e-4, rtol=2e-4), (
        "mismatch vs JAX reference: max abs err = %g"
        % float(jnp.max(jnp.abs(out - ref))))

    print("KERNEL_OK")
</pallas_src>

<mosaic_0001>
module attributes {stable_mosaic.version = 11 : i64} {
  func.func @_eblock_kernel(%arg0: i32, %arg1: memref<1x16x128xf32, #tpu.memory_space<vmem>>, %arg2: memref<4x3x128x128xf32, #tpu.memory_space<vmem>>, %arg3: memref<4x1x128xf32, #tpu.memory_space<vmem>>, %arg4: memref<1x16x128xf32, #tpu.memory_space<vmem>>) attributes {dimension_semantics = [#tpu.dimension_semantics<parallel>], iteration_bounds = array<i64: 2>, scalar_prefetch = 0 : i64, scratch_operands = 0 : i64, tpu.core_type = #tpu.core_type<tc>, window_params = [{transform_indices = @transform_0, window_bounds = array<i64: 1, 16, 128>}, {pipeline_mode = #tpu.pipeline_mode<synchronous>, transform_indices = @transform_1, window_bounds = array<i64: 4, 3, 128, 128>}, {pipeline_mode = #tpu.pipeline_mode<synchronous>, transform_indices = @transform_2, window_bounds = array<i64: 4, 1, 128>}, {transform_indices = @transform_3, window_bounds = array<i64: 1, 16, 128>}]} {
    %c0 = arith.constant 0 : index
    %c0_0 = arith.constant 0 : index
    %c0_1 = arith.constant 0 : index
    %0 = vector.load %arg1[%c0, %c0_0, %c0_1] : memref<1x16x128xf32, #tpu.memory_space<vmem>>, vector<1x16x128xf32>
    %1 = vector.shape_cast %0 : vector<1x16x128xf32> to vector<16x128xf32>
    %cst = arith.constant 0.000000e+00 : f32
    %2 = vector.broadcast %cst : f32 to vector<1x128xf32>
    %3 = vector.extract_strided_slice %1 {offsets = [0, 0], sizes = [15, 128], strides = [1, 1]} : vector<16x128xf32> to vector<15x128xf32>
    %4 = tpu.concatenate %2, %3 in 0 : vector<1x128xf32>, vector<15x128xf32> -> vector<16x128xf32>
    %5 = vector.extract_strided_slice %1 {offsets = [1, 0], sizes = [15, 128], strides = [1, 1]} : vector<16x128xf32> to vector<15x128xf32>
    %6 = tpu.concatenate %5, %2 in 0 : vector<15x128xf32>, vector<1x128xf32> -> vector<16x128xf32>
    %c0_2 = arith.constant 0 : index
    %c0_3 = arith.constant 0 : index
    %c0_4 = arith.constant 0 : index
    %c0_5 = arith.constant 0 : index
    %7 = vector.load %arg2[%c0_2, %c0_3, %c0_4, %c0_5] : memref<4x3x128x128xf32, #tpu.memory_space<vmem>>, vector<1x1x128x128xf32>
    %8 = vector.shape_cast %7 : vector<1x1x128x128xf32> to vector<128x128xf32>
    %cst_6 = arith.constant dense<0.000000e+00> : vector<16x128xf32>
    %9 = tpu.matmul %4, %8, %cst_6 {dimension_numbers = #tpu.dot_dimension_numbers<[1], [0], [0], [1], [0, 0, 1, 1], [], []>} : vector<16x128xf32>, vector<128x128xf32>, vector<16x128xf32> -> vector<16x128xf32>
    %c0_7 = arith.constant 0 : index
    %c1 = arith.constant 1 : index
    %c0_8 = arith.constant 0 : index
    %c0_9 = arith.constant 0 : index
    %10 = vector.load %arg2[%c0_7, %c1, %c0_8, %c0_9] : memref<4x3x128x128xf32, #tpu.memory_space<vmem>>, vector<1x1x128x128xf32>
    %11 = vector.shape_cast %10 : vector<1x1x128x128xf32> to vector<128x128xf32>
    %cst_10 = arith.constant dense<0.000000e+00> : vector<16x128xf32>
    %12 = tpu.matmul %1, %11, %cst_10 {dimension_numbers = #tpu.dot_dimension_numbers<[1], [0], [0], [1], [0, 0, 1, 1], [], []>} : vector<16x128xf32>, vector<128x128xf32>, vector<16x128xf32> -> vector<16x128xf32>
    %13 = arith.addf %9, %12 : vector<16x128xf32>
    %c0_11 = arith.constant 0 : index
    %c2 = arith.constant 2 : index
    %c0_12 = arith.constant 0 : index
    %c0_13 = arith.constant 0 : index
    %14 = vector.load %arg2[%c0_11, %c2, %c0_12, %c0_13] : memref<4x3x128x128xf32, #tpu.memory_space<vmem>>, vector<1x1x128x128xf32>
    %15 = vector.shape_cast %14 : vector<1x1x128x128xf32> to vector<128x128xf32>
    %cst_14 = arith.constant dense<0.000000e+00> : vector<16x128xf32>
    %16 = tpu.matmul %6, %15, %cst_14 {dimension_numbers = #tpu.dot_dimension_numbers<[1], [0], [0], [1], [0, 0, 1, 1], [], []>} : vector<16x128xf32>, vector<128x128xf32>, vector<16x128xf32> -> vector<16x128xf32>
    %17 = arith.addf %13, %16 : vector<16x128xf32>
    %c0_15 = arith.constant 0 : index
    %c0_16 = arith.constant 0 : index
    %c0_17 = arith.constant 0 : index
    %18 = vector.load %arg3[%c0_15, %c0_16, %c0_17] : memref<4x1x128xf32, #tpu.memory_space<vmem>>, vector<1x1x128xf32>
    %19 = vector.shape_cast %18 : vector<1x1x128xf32> to vector<1x128xf32>
    %20 = vector.broadcast %19 : vector<1x128xf32> to vector<16x128xf32>
    %21 = arith.addf %17, %20 : vector<16x128xf32>
    %cst_18 = arith.constant 0.000000e+00 : f32
    %22 = vector.broadcast %cst_18 : f32 to vector<16x128xf32>
    %23 = arith.maximumf %21, %22 : vector<16x128xf32>
    %24 = vector.extract_strided_slice %23 {offsets = [0, 0], sizes = [15, 128], strides = [1, 1]} : vector<16x128xf32> to vector<15x128xf32>
    %25 = tpu.concatenate %2, %24 in 0 : vector<1x128xf32>, vector<15x128xf32> -> vector<16x128xf32>
    %26 = vector.extract_strided_slice %23 {offsets = [1, 0], sizes = [15, 128], strides = [1, 1]} : vector<16x128xf32> to vector<15x128xf32>
    %27 = tpu.concatenate %26, %2 in 0 : vector<15x128xf32>, vector<1x128xf32> -> vector<16x128xf32>
    %c1_19 = arith.constant 1 : index
    %c0_20 = arith.constant 0 : index
    %c0_21 = arith.constant 0 : index
    %c0_22 = arith.constant 0 : index
    %28 = vector.load %arg2[%c1_19, %c0_20, %c0_21, %c0_22] : memref<4x3x128x128xf32, #tpu.memory_space<vmem>>, vector<1x1x128x128xf32>
    %29 = vector.shape_cast %28 : vector<1x1x128x128xf32> to vector<128x128xf32>
    %cst_23 = arith.constant dense<0.000000e+00> : vector<16x128xf32>
    %30 = tpu.matmul %25, %29, %cst_23 {dimension_numbers = #tpu.dot_dimension_numbers<[1], [0], [0], [1], [0, 0, 1, 1], [], []>} : vector<16x128xf32>, vector<128x128xf32>, vector<16x128xf32> -> vector<16x128xf32>
    %c1_24 = arith.constant 1 : index
    %c1_25 = arith.constant 1 : index
    %c0_26 = arith.constant 0 : index
    %c0_27 = arith.constant 0 : index
    %31 = vector.load %arg2[%c1_24, %c1_25, %c0_26, %c0_27] : memref<4x3x128x128xf32, #tpu.memory_space<vmem>>, vector<1x1x128x128xf32>
    %32 = vector.shape_cast %31 : vector<1x1x128x128xf32> to vector<128x128xf32>
    %cst_28 = arith.constant dense<0.000000e+00> : vector<16x128xf32>
    %33 = tpu.matmul %23, %32, %cst_28 {dimension_numbers = #tpu.dot_dimension_numbers<[1], [0], [0], [1], [0, 0, 1, 1], [], []>} : vector<16x128xf32>, vector<128x128xf32>, vector<16x128xf32> -> vector<16x128xf32>
    %34 = arith.addf %30, %33 : vector<16x128xf32>
    %c1_29 = arith.constant 1 : index
    %c2_30 = arith.constant 2 : index
    %c0_31 = arith.constant 0 : index
    %c0_32 = arith.constant 0 : index
    %35 = vector.load %arg2[%c1_29, %c2_30, %c0_31, %c0_32] : memref<4x3x128x128xf32, #tpu.memory_space<vmem>>, vector<1x1x128x128xf32>
    %36 = vector.shape_cast %35 : vector<1x1x128x128xf32> to vector<128x128xf32>
    %cst_33 = arith.constant dense<0.000000e+00> : vector<16x128xf32>
    %37 = tpu.matmul %27, %36, %cst_33 {dimension_numbers = #tpu.dot_dimension_numbers<[1], [0], [0], [1], [0, 0, 1, 1], [], []>} : vector<16x128xf32>, vector<128x128xf32>, vector<16x128xf32> -> vector<16x128xf32>
    %38 = arith.addf %34, %37 : vector<16x128xf32>
    %c1_34 = arith.constant 1 : index
    %c0_35 = arith.constant 0 : index
    %c0_36 = arith.constant 0 : index
    %39 = vector.load %arg3[%c1_34, %c0_35, %c0_36] : memref<4x1x128xf32, #tpu.memory_space<vmem>>, vector<1x1x128xf32>
    %40 = vector.shape_cast %39 : vector<1x1x128xf32> to vector<1x128xf32>
    %41 = vector.broadcast %40 : vector<1x128xf32> to vector<16x128xf32>
    %42 = arith.addf %38, %41 : vector<16x128xf32>
    %43 = arith.addf %42, %1 : vector<16x128xf32>
    %44 = vector.extract_strided_slice %43 {offsets = [0, 0], sizes = [15, 128], strides = [1, 1]} : vector<16x128xf32> to vector<15x128xf32>
    %45 = tpu.concatenate %2, %44 in 0 : vector<1x128xf32>, vector<15x128xf32> -> vector<16x128xf32>
    %46 = vector.extract_strided_slice %43 {offsets = [1, 0], sizes = [15, 128], strides = [1, 1]} : vector<16x128xf32> to vector<15x128xf32>
    %47 = tpu.concatenate %46, %2 in 0 : vector<15x128xf32>, vector<1x128xf32> -> vector<16x128xf32>
    %c2_37 = arith.constant 2 : index
    %c0_38 = arith.constant 0 : index
    %c0_39 = arith.constant 0 : index
    %c0_40 = arith.constant 0 : index
    %48 = vector.load %arg2[%c2_37, %c0_38, %c0_39, %c0_40] : memref<4x3x128x128xf32, #tpu.memory_space<vmem>>, vector<1x1x128x128xf32>
    %49 = vector.shape_cast %48 : vector<1x1x128x128xf32> to vector<128x128xf32>
    %cst_41 = arith.constant dense<0.000000e+00> : vector<16x128xf32>
    %50 = tpu.matmul %45, %49, %cst_41 {dimension_numbers = #tpu.dot_dimension_numbers<[1], [0], [0], [1], [0, 0, 1, 1], [], []>} : vector<16x128xf32>, vector<128x128xf32>, vector<16x128xf32> -> vector<16x128xf32>
    %c2_42 = arith.constant 2 : index
    %c1_43 = arith.constant 1 : index
    %c0_44 = arith.constant 0 : index
    %c0_45 = arith.constant 0 : index
    %51 = vector.load %arg2[%c2_42, %c1_43, %c0_44, %c0_45] : memref<4x3x128x128xf32, #tpu.memory_space<vmem>>, vector<1x1x128x128xf32>
    %52 = vector.shape_cast %51 : vector<1x1x128x128xf32> to vector<128x128xf32>
    %cst_46 = arith.constant dense<0.000000e+00> : vector<16x128xf32>
    %53 = tpu.matmul %43, %52, %cst_46 {dimension_numbers = #tpu.dot_dimension_numbers<[1], [0], [0], [1], [0, 0, 1, 1], [], []>} : vector<16x128xf32>, vector<128x128xf32>, vector<16x128xf32> -> vector<16x128xf32>
    %54 = arith.addf %50, %53 : vector<16x128xf32>
    %c2_47 = arith.constant 2 : index
    %c2_48 = arith.constant 2 : index
    %c0_49 = arith.constant 0 : index
    %c0_50 = arith.constant 0 : index
    %55 = vector.load %arg2[%c2_47, %c2_48, %c0_49, %c0_50] : memref<4x3x128x128xf32, #tpu.memory_space<vmem>>, vector<1x1x128x128xf32>
    %56 = vector.shape_cast %55 : vector<1x1x128x128xf32> to vector<128x128xf32>
    %cst_51 = arith.constant dense<0.000000e+00> : vector<16x128xf32>
    %57 = tpu.matmul %47, %56, %cst_51 {dimension_numbers = #tpu.dot_dimension_numbers<[1], [0], [0], [1], [0, 0, 1, 1], [], []>} : vector<16x128xf32>, vector<128x128xf32>, vector<16x128xf32> -> vector<16x128xf32>
    %58 = arith.addf %54, %57 : vector<16x128xf32>
    %c2_52 = arith.constant 2 : index
    %c0_53 = arith.constant 0 : index
    %c0_54 = arith.constant 0 : index
    %59 = vector.load %arg3[%c2_52, %c0_53, %c0_54] : memref<4x1x128xf32, #tpu.memory_space<vmem>>, vector<1x1x128xf32>
    %60 = vector.shape_cast %59 : vector<1x1x128xf32> to vector<1x128xf32>
    %61 = vector.broadcast %60 : vector<1x128xf32> to vector<16x128xf32>
    %62 = arith.addf %58, %61 : vector<16x128xf32>
    %cst_55 = arith.constant 0.000000e+00 : f32
    %63 = vector.broadcast %cst_55 : f32 to vector<16x128xf32>
    %64 = arith.maximumf %62, %63 : vector<16x128xf32>
    %65 = vector.extract_strided_slice %64 {offsets = [0, 0], sizes = [15, 128], strides = [1, 1]} : vector<16x128xf32> to vector<15x128xf32>
    %66 = tpu.concatenate %2, %65 in 0 : vector<1x128xf32>, vector<15x128xf32> -> vector<16x128xf32>
    %67 = vector.extract_strided_slice %64 {offsets = [1, 0], sizes = [15, 128], strides = [1, 1]} : vector<16x128xf32> to vector<15x128xf32>
    %68 = tpu.concatenate %67, %2 in 0 : vector<15x128xf32>, vector<1x128xf32> -> vector<16x128xf32>
    %c3 = arith.constant 3 : index
    %c0_56 = arith.constant 0 : index
    %c0_57 = arith.constant 0 : index
    %c0_58 = arith.constant 0 : index
    %69 = vector.load %arg2[%c3, %c0_56, %c0_57, %c0_58] : memref<4x3x128x128xf32, #tpu.memory_space<vmem>>, vector<1x1x128x128xf32>
    %70 = vector.shape_cast %69 : vector<1x1x128x128xf32> to vector<128x128xf32>
    %cst_59 = arith.constant dense<0.000000e+00> : vector<16x128xf32>
    %71 = tpu.matmul %66, %70, %cst_59 {dimension_numbers = #tpu.dot_dimension_numbers<[1], [0], [0], [1], [0, 0, 1, 1], [], []>} : vector<16x128xf32>, vector<128x128xf32>, vector<16x128xf32> -> vector<16x128xf32>
    %c3_60 = arith.constant 3 : index
    %c1_61 = arith.constant 1 : index
    %c0_62 = arith.constant 0 : index
    %c0_63 = arith.constant 0 : index
    %72 = vector.load %arg2[%c3_60, %c1_61, %c0_62, %c0_63] : memref<4x3x128x128xf32, #tpu.memory_space<vmem>>, vector<1x1x128x128xf32>
    %73 = vector.shape_cast %72 : vector<1x1x128x128xf32> to vector<128x128xf32>
    %cst_64 = arith.constant dense<0.000000e+00> : vector<16x128xf32>
    %74 = tpu.matmul %64, %73, %cst_64 {dimension_numbers = #tpu.dot_dimension_numbers<[1], [0], [0], [1], [0, 0, 1, 1], [], []>} : vector<16x128xf32>, vector<128x128xf32>, vector<16x128xf32> -> vector<16x128xf32>
    %75 = arith.addf %71, %74 : vector<16x128xf32>
    %c3_65 = arith.constant 3 : index
    %c2_66 = arith.constant 2 : index
    %c0_67 = arith.constant 0 : index
    %c0_68 = arith.constant 0 : index
    %76 = vector.load %arg2[%c3_65, %c2_66, %c0_67, %c0_68] : memref<4x3x128x128xf32, #tpu.memory_space<vmem>>, vector<1x1x128x128xf32>
    %77 = vector.shape_cast %76 : vector<1x1x128x128xf32> to vector<128x128xf32>
    %cst_69 = arith.constant dense<0.000000e+00> : vector<16x128xf32>
    %78 = tpu.matmul %68, %77, %cst_69 {dimension_numbers = #tpu.dot_dimension_numbers<[1], [0], [0], [1], [0, 0, 1, 1], [], []>} : vector<16x128xf32>, vector<128x128xf32>, vector<16x128xf32> -> vector<16x128xf32>
    %79 = arith.addf %75, %78 : vector<16x128xf32>
    %c3_70 = arith.constant 3 : index
    %c0_71 = arith.constant 0 : index
    %c0_72 = arith.constant 0 : index
    %80 = vector.load %arg3[%c3_70, %c0_71, %c0_72] : memref<4x1x128xf32, #tpu.memory_space<vmem>>, vector<1x1x128xf32>
    %81 = vector.shape_cast %80 : vector<1x1x128xf32> to vector<1x128xf32>
    %82 = vector.broadcast %81 : vector<1x128xf32> to vector<16x128xf32>
    %83 = arith.addf %79, %82 : vector<16x128xf32>
    %84 = arith.addf %83, %43 : vector<16x128xf32>
    %c0_73 = arith.constant 0 : index
    %c0_74 = arith.constant 0 : index
    %c0_75 = arith.constant 0 : index
    %85 = vector.load %arg4[%c0_73, %c0_74, %c0_75] : memref<1x16x128xf32, #tpu.memory_space<vmem>>, vector<1x16x128xf32>
    %86 = vector.shape_cast %85 : vector<1x16x128xf32> to vector<16x128xf32>
    %87 = vector.shape_cast %84 : vector<16x128xf32> to vector<1x16x128xf32>
    tpu.vector_store %arg4[%c0_73, %c0_74, %c0_75], %87 {strides = array<i32>} : memref<1x16x128xf32, #tpu.memory_space<vmem>>, vector<1x16x128xf32>,
    return
  }
  func.func @transform_0(%arg0: i32) -> (i32, i32, i32) {
    %c0_i32 = arith.constant 0 : i32
    %c0_i32_0 = arith.constant 0 : i32
    %c0_i32_1 = arith.constant 0 : i32
    return %arg0, %c0_i32, %c0_i32_0 : i32, i32, i32
  }
  func.func @transform_1(%arg0: i32) -> (i32, i32, i32, i32) {
    %c0_i32 = arith.constant 0 : i32
    %c0_i32_0 = arith.constant 0 : i32
    %c0_i32_1 = arith.constant 0 : i32
    %c0_i32_2 = arith.constant 0 : i32
    %c0_i32_3 = arith.constant 0 : i32
    return %c0_i32, %c0_i32_0, %c0_i32_1, %c0_i32_2 : i32, i32, i32, i32
  }
  func.func @transform_2(%arg0: i32) -> (i32, i32, i32) {
    %c0_i32 = arith.constant 0 : i32
    %c0_i32_0 = arith.constant 0 : i32
    %c0_i32_1 = arith.constant 0 : i32
    %c0_i32_2 = arith.constant 0 : i32
    return %c0_i32, %c0_i32_0, %c0_i32_1 : i32, i32, i32
  }
  func.func @transform_3(%arg0: i32) -> (i32, i32, i32) {
    %c0_i32 = arith.constant 0 : i32
    %c0_i32_0 = arith.constant 0 : i32
    %c0_i32_1 = arith.constant 0 : i32
    return %arg0, %c0_i32, %c0_i32_0 : i32, i32, i32
  }
}

</mosaic_0001>

<llo_original>
// kernel: tile.23
$region0: #{tile.23}
  #allocation0 [shape = 's32[1]{0}', space=sflag, size = 0x4, scoped, tag = 'scoped memory for tile.23']
  %s0 = inlined_call_operand.vmem [shape: f32[8], index: 0, kind: input, shape index: {}]
  %s1 = inlined_call_operand.vmem [shape: f32[16,8], index: 1, kind: output, shape index: {}]
  // Predicated region
  $region2: #{tile.23} parent=0 // pred_check
    _
  $region3: #{tile.23} parent=0 // pred_check_branch
    %3 = sbr.rel (0) target = $region5
  $region4: #{tile.23} parent=0 // pred_region
    _
  $region5: #{tile.23} parent=0 // pred_fallthru
    _
  %v4 = vld [vmem:[%s0] ss:$0 sm:$0xff]
  %5 = vst [vmem:[%s1] sm:$0xff] %v4
  %s6 = scalar_lea.vmem %s1, 8
  %7 = vst [vmem:[%s6] sm:$0xff] %v4

// kernel: tile.36
$region0: #{tile.36}
  %s0 = inlined_call_operand.vmem [shape: f32[16,8], index: 0, kind: input, shape index: {}]
  %s1 = inlined_call_operand.vmem [shape: f32[1,1,128], index: 1, kind: output, shape index: {}]
  $region1: #{tile.36} parent=0
    #allocation0 [shape = 'u8[4096]{0}', space=vmem, size = 0x1000, scoped, tag = 'scoped mem for output reshape']
    %v2 = vld [vmem:[%s0] sm:$0x1]
    %vm3 = vcmask 64512
    %4 = vst.msk [vmem:[#allocation0] sm:$0x1] %vm3, %v2
    %s5 = scalar_lea.vmem %s0, 15
    %v6 = vld [vmem:[%s5] sm:$0x1]
    %7 = vrot.lane.b32.xlu0 %v6, 120
    %v8 = vpop.permute.xlu0 %7
    %vm9 = vcmask 1048512
    %10 = vst.msk [vmem:[#allocation0] sm:$0x1] %vm9, %v8
    %s11 = scalar_lea.vmem %s0, 14
    %v12 = vld [vmem:[%s11] sm:$0x1]
    %13 = vrot.lane.b32.xlu0 %v12, 112
    %v14 = vpop.permute.xlu0 %13
    %vm15 = vcmask 982912
    %16 = vst.msk [vmem:[#allocation0] sm:$0x1] %vm15, %v14
    %s17 = scalar_lea.vmem %s0, 13
    %v18 = vld [vmem:[%s17] sm:$0x1]
    %19 = vrot.lane.b32.xlu0 %v18, 104
    %v20 = vpop.permute.xlu0 %19
    %vm21 = vcmask 917312
    %22 = vst.msk [vmem:[#allocation0] sm:$0x1] %vm21, %v20
    %s23 = scalar_lea.vmem %s0, 12
    %v24 = vld [vmem:[%s23] sm:$0x1]
    %25 = vrot.lane.b32.xlu0 %v24, 96
    %v26 = vpop.permute.xlu0 %25
    %vm27 = vcmask 851712
    %28 = vst.msk [vmem:[#allocation0] sm:$0x1] %vm27, %v26
    %s29 = scalar_lea.vmem %s0, 11
    %v30 = vld [vmem:[%s29] sm:$0x1]
    %31 = vrot.lane.b32.xlu0 %v30, 88
    %v32 = vpop.permute.xlu0 %31
    %vm33 = vcmask 786112
    %34 = vst.msk [vmem:[#allocation0] sm:$0x1] %vm33, %v32
    %s35 = scalar_lea.vmem %s0, 10
    %v36 = vld [vmem:[%s35] sm:$0x1]
    %37 = vrot.lane.b32.xlu0 %v36, 80
    %v38 = vpop.permute.xlu0 %37
    %vm39 = vcmask 720512
    %40 = vst.msk [vmem:[#allocation0] sm:$0x1] %vm39, %v38
    %s41 = scalar_lea.vmem %s0, 9
    %v42 = vld [vmem:[%s41] sm:$0x1]
    %43 = vrot.lane.b32.xlu0 %v42, 72
    %v44 = vpop.permute.xlu0 %43
    %vm45 = vcmask 654912
    %46 = vst.msk [vmem:[#allocation0] sm:$0x1] %vm45, %v44
    %s47 = scalar_lea.vmem %s0, 8
    %v48 = vld [vmem:[%s47] sm:$0x1]
    %49 = vrot.lane.b32.xlu0 %v48, 64
    %v50 = vpop.permute.xlu0 %49
    %vm51 = vcmask 589312
    %52 = vst.msk [vmem:[#allocation0] sm:$0x1] %vm51, %v50
    %s53 = scalar_lea.vmem %s0, 7
    %v54 = vld [vmem:[%s53] sm:$0x1]
    %55 = vrot.lane.b32.xlu0 %v54, 56
    %v56 = vpop.permute.xlu0 %55
    %vm57 = vcmask 523712
    %58 = vst.msk [vmem:[#allocation0] sm:$0x1] %vm57, %v56
    %s59 = scalar_lea.vmem %s0, 6
    %v60 = vld [vmem:[%s59] sm:$0x1]
    %61 = vrot.lane.b32.xlu0 %v60, 48
    %v62 = vpop.permute.xlu0 %61
    %vm63 = vcmask 458112
    %64 = vst.msk [vmem:[#allocation0] sm:$0x1] %vm63, %v62
    %s65 = scalar_lea.vmem %s0, 5
    %v66 = vld [vmem:[%s65] sm:$0x1]
    %67 = vrot.lane.b32.xlu0 %v66, 40
    %v68 = vpop.permute.xlu0 %67
    %vm69 = vcmask 392512
    %70 = vst.msk [vmem:[#allocation0] sm:$0x1] %vm69, %v68
    %s71 = scalar_lea.vmem %s0, 4
    %v72 = vld [vmem:[%s71] sm:$0x1]
    %73 = vrot.lane.b32.xlu0 %v72, 32
    %v74 = vpop.permute.xlu0 %73
    %vm75 = vcmask 326912
    %76 = vst.msk [vmem:[#allocation0] sm:$0x1] %vm75, %v74
    %s77 = scalar_lea.vmem %s0, 3
    %v78 = vld [vmem:[%s77] sm:$0x1]
    %79 = vrot.lane.b32.xlu0 %v78, 24
    %v80 = vpop.permute.xlu0 %79
    %vm81 = vcmask 261312
    %82 = vst.msk [vmem:[#allocation0] sm:$0x1] %vm81, %v80
    %s83 = scalar_lea.vmem %s0, 2
    %v84 = vld [vmem:[%s83] sm:$0x1]
    %85 = vrot.lane.b32.xlu0 %v84, 16
    %v86 = vpop.permute.xlu0 %85
    %vm87 = vcmask 195712
    %88 = vst.msk [vmem:[#allocation0] sm:$0x1] %vm87, %v86
    %s89 = scalar_lea.vmem %s0, 1
    %v90 = vld [vmem:[%s89] sm:$0x1]
    %91 = vrot.lane.b32.xlu0 %v90, 8
    %v92 = vpop.permute.xlu0 %91
    %vm93 = vcmask 130112
    %94 = vst.msk [vmem:[#allocation0] sm:$0x1] %vm93, %v92
    %s96 = ssub.s32 2, 1
    %v97 = vld [vmem:[#allocation0] sm:%s96]
    %s99 = ssub.s32 2, 1
    %100 = vst [vmem:[%s1] sm:%s99] %v97

// kernel: eblock_forward.1
$region0: #{eblock_forward.1}
  #allocation0 [shape = 'u32[]', space=smem, size = 0x4, offset = 0x4, fixed_abs, tag = 'smem constant byte address 0x4 - core index']
  #allocation1 [shape = 'u32[72,128]{1,0:T(1,128)}', space=vmem, size = 0x9000, scoped, tag = 'internal scratch']
  %s0 = inlined_call_operand.vmem [shape: f32[2,16,128], index: 0, kind: input, shape index: {}]
  %s1 = inlined_call_operand.vmem [shape: f32[4,3,128,128], index: 1, kind: input, shape index: {}]
  %s2 = inlined_call_operand.vmem [shape: f32[4,1,128], index: 2, kind: input, shape index: {}]
  %s3 = inlined_call_operand.vmem [shape: f32[2,16,128], index: 3, kind: output, shape index: {}]
  %s4 = sld [smem:[#allocation0]]
  $region45: #{eblock_forward.1} parent=0
    _
  %s6 = ssub.s32 1, %s4
  %s7 = scalar_select 0, %s6, %s4
  loop: start=0, step=1, limit=4
  $region2: #{eblock_forward.1} parent=0 // loop_pre_header
    _
  $region3: #{eblock_forward.1} parent=0 // loop_header
    %s9 = sphi 0, %s13
    %p10 = scmp.ge.s32.totalorder %s9, 4
    %s19 = sphi 0, %s21
    %s22 = sphi 0, %s19
    %s23 = sphi 0, %s22
    %s39 = sphi 0, %s23
    %s43 = sphi 0, %s43
    %s45 = sphi 0, %s43
    %s46 = sphi 0, %s45
    %s60 = sphi 0, %s46
    %s64 = sphi 0, %s64
    %s66 = sphi 0, %s64
    %s67 = sphi 0, %s66
    %s81 = sphi 0, %s67
    %s87 = sphi 0, %s89
    %s90 = sphi 0, %s87
    %s91 = sphi 0, %s90
    %s107 = sphi 0, %s91
  $region4: #{eblock_forward.1} parent=0 // loop_header_branch
    %12 = sbr.rel (%p10) target = $region8
  $region5: #{eblock_forward.1} parent=0 // loop_body
    %s14 = ssub.s32 %s9, 1
    %s15 = ssub.s32 %s9, 2
    %s16 = sadd.s32 %s9, 1
    %s17 = ssub.s32 %s9, %s16
    %p18 = scmp.eq.s32.totalorder %s17, 0
    %s20 = sadd.s32 %s19, 1
    %s21 = scalar_select %p18, %s19, %s20
    %p24 = pneg %p18
    %p25 = scmp.eq.s32.totalorder %s9, 1
    %p26 = por %p24, %p25
    %p27 = scmp.ne.s32.totalorder %s19, %s22
    %p28 = scmp.eq.s32.totalorder %s9, 0
    %p29 = por %p27, %p28
    %p30 = scmp.ne.s32.totalorder %s19, %s22
    %p31 = scmp.eq.s32.totalorder %s14, 1
    %p32 = por %p30, %p31
    %p33 = scmp.ne.s32.totalorder %s22, %s23
    %p34 = scmp.eq.s32.totalorder %s14, 0
    %p35 = por %p33, %p34
    %p36 = scmp.ne.s32.totalorder %s22, %s23
    %p37 = scmp.eq.s32.totalorder %s15, 1
    %p38 = por %p36, %p37
    %p40 = scmp.ne.s32.totalorder %s23, %s39
    %p41 = scmp.eq.s32.totalorder %s15, 0
    %p42 = por %p40, %p41
    %s44 = sadd.s32 %s43, 1
    %p47 = scmp.eq.s32.totalorder %s9, 1
    %p48 = scmp.ne.s32.totalorder %s43, %s45
    %p49 = scmp.eq.s32.totalorder %s9, 0
    %p50 = por %p48, %p49
    %p51 = scmp.ne.s32.totalorder %s43, %s45
    %p52 = scmp.eq.s32.totalorder %s14, 1
    %p53 = por %p51, %p52
    %p54 = scmp.ne.s32.totalorder %s45, %s46
    %p55 = scmp.eq.s32.totalorder %s14, 0
    %p56 = por %p54, %p55
    %p57 = scmp.ne.s32.totalorder %s45, %s46
    %p58 = scmp.eq.s32.totalorder %s15, 1
    %p59 = por %p57, %p58
    %p61 = scmp.ne.s32.totalorder %s46, %s60
    %p62 = scmp.eq.s32.totalorder %s15, 0
    %p63 = por %p61, %p62
    %s65 = sadd.s32 %s64, 1
    %p68 = scmp.eq.s32.totalorder %s9, 1
    %p69 = scmp.ne.s32.totalorder %s64, %s66
    %p70 = scmp.eq.s32.totalorder %s9, 0
    %p71 = por %p69, %p70
    %p72 = scmp.ne.s32.totalorder %s64, %s66
    %p73 = scmp.eq.s32.totalorder %s14, 1
    %p74 = por %p72, %p73
    %p75 = scmp.ne.s32.totalorder %s66, %s67
    %p76 = scmp.eq.s32.totalorder %s14, 0
    %p77 = por %p75, %p76
    %p78 = scmp.ne.s32.totalorder %s66, %s67
    %p79 = scmp.eq.s32.totalorder %s15, 1
    %p80 = por %p78, %p79
    %p82 = scmp.ne.s32.totalorder %s67, %s81
    %p83 = scmp.eq.s32.totalorder %s15, 0
    %p84 = por %p82, %p83
    %s85 = ssub.s32 %s9, %s16
    %p86 = scmp.eq.s32.totalorder %s85, 0
    %s88 = sadd.s32 %s87, 1
    %s89 = scalar_select %p86, %s87, %s88
    %p92 = pneg %p86
    %p93 = scmp.eq.s32.totalorder %s9, 1
    %p94 = por %p92, %p93
    %p95 = scmp.ne.s32.totalorder %s87, %s90
    %p96 = scmp.eq.s32.totalorder %s9, 0
    %p97 = por %p95, %p96
    %p98 = scmp.ne.s32.totalorder %s87, %s90
    %p99 = scmp.eq.s32.totalorder %s14, 1
    %p100 = por %p98, %p99
    %p101 = scmp.ne.s32.totalorder %s90, %s91
    %p102 = scmp.eq.s32.totalorder %s14, 0
    %p103 = por %p101, %p102
    %p104 = scmp.ne.s32.totalorder %s90, %s91
    %p105 = scmp.eq.s32.totalorder %s15, 1
    %p106 = por %p104, %p105
    %p108 = scmp.ne.s32.totalorder %s91, %s107
    %p109 = scmp.eq.s32.totalorder %s15, 0
    %p110 = por %p108, %p109
    %p111 = scmp.le.s32.totalorder 1, %s9
    %p112 = scmp.lt.s32.totalorder %s9, 3
    %p113 = pnand %p111, %p112
    %p114 = pneg %p113
    // Predicated region
    $region9: #{eblock_forward.1} parent=5 // pred_check
      _
    $region10: #{eblock_forward.1} parent=5 // pred_check_branch
      %116 = sbr.rel (%p113) target = $region12
    $region11: #{eblock_forward.1} parent=5 // pred_region
      %s117 = ssub.s32 %s9, 1
      // Predicated region
      $region13: #{eblock_forward.1} parent=11 // pred_check
        %p118 = pneg %p56
      $region14: #{eblock_forward.1} parent=11 // pred_check_branch
        %120 = sbr.rel (%p118) target = $region16
      $region15: #{eblock_forward.1} parent=11 // pred_region
        _
      $region16: #{eblock_forward.1} parent=11 // pred_fallthru
        _
      // Predicated region
      $region17: #{eblock_forward.1} parent=11 // pred_check
        %p121 = pneg %p77
      $region18: #{eblock_forward.1} parent=11 // pred_check_branch
        %123 = sbr.rel (%p121) target = $region20
      $region19: #{eblock_forward.1} parent=11 // pred_region
        _
      $region20: #{eblock_forward.1} parent=11 // pred_fallthru
        _
    $region12: #{eblock_forward.1} parent=5 // pred_fallthru
      _
    %p124 = scmp.lt.s32.totalorder %s9, 2
    // Predicated region
    $region21: #{eblock_forward.1} parent=5 // pred_check
      %p125 = pneg %p124
    $region22: #{eblock_forward.1} parent=5 // pred_check_branch
      %127 = sbr.rel (%p125) target = $region24
    $region23: #{eblock_forward.1} parent=5 // pred_region
      // Predicated region
      $region25: #{eblock_forward.1} parent=23 // pred_check
        %p128 = pneg %p29
      $region26: #{eblock_forward.1} parent=23 // pred_check_branch
        %130 = sbr.rel (%p128) target = $region28
      $region27: #{eblock_forward.1} parent=23 // pred_region
        %p131 = scmp.lt.s32.totalorder %s9, 1
        %s132 = scalar_select %p131, %s9, 1
        %s133 = smul.addr %s132, 2
        %s134 = smul.addr %s133, 8
        %s135 = scalar_lea.vmem %s0, %s134
      $region28: #{eblock_forward.1} parent=23 // pred_fallthru
        _
    $region24: #{eblock_forward.1} parent=5 // pred_fallthru
      _
    %p136 = scmp.le.s32.totalorder 1, %s9
    %p137 = scmp.lt.s32.totalorder %s9, 3
    %p138 = pnand %p136, %p137
    %p139 = pneg %p138
    // Predicated region
    $region29: #{eblock_forward.1} parent=5 // pred_check
      _
    $region30: #{eblock_forward.1} parent=5 // pred_check_branch
      %141 = sbr.rel (%p138) target = $region32
    $region31: #{eblock_forward.1} parent=5 // pred_region
      %s142 = ssub.s32 %s9, 1
      %p143 = scmp.lt.s32.totalorder %s14, 1
      %s144 = scalar_select %p143, %s14, 1
      %s145 = smul.addr %s144, 2
      %s146 = smul.addr %s145, 8
      %s147 = scalar_lea.vmem %s0, %s146
      %p148 = pneg %p35
      %p149 = pneg %p32
      %p150 = pneg %p56
      %p151 = pneg %p53
      %p152 = pneg %p77
      %p153 = pneg %p74
      %p154 = pneg %p103
      %p155 = pneg %p100
      %p156 = scmp.lt.s32.totalorder %s14, 1
      %s157 = scalar_select %p156, %s14, 1
      %s158 = smul.addr %s157, 2
      %s159 = smul.addr %s158, 8
      %s160 = scalar_lea.vmem %s3, %s159
      %p161 = scmp.lt.s32.totalorder %s14, 1
      %s162 = scalar_select %p161, %s14, 1
      %s163 = smul.addr %s162, 2
      %s164 = smul.addr %s163, 8
      %s165 = scalar_lea.vmem %s0, %s164
      %p166 = scmp.lt.s32.totalorder %s14, 1
      %s167 = scalar_select %p166, %s14, 1
      %s168 = smul.addr %s167, 2
      %s169 = smul.addr %s168, 8
      %s170 = scalar_lea.vmem %s3, %s169
      %v171 = vld [vmem:[%s165] sm:$0xff]
      %v172 = vld [vmem:[%s165 + $0x8] sm:$0xff]
      %vm175 = vcmask 1040384
      %v176 = vrot.slane %v171, 7
      %v177 = vrot.slane %v172, 7
      %v178 = vsel %vm175, %v176, %v177
      %v181 = vsel %vm175, 0.0, %v176
      %vm182 = vcmask 1046528
      %v183 = vrot.slane %v171, 1
      %v184 = vrot.slane %v172, 1
      %v185 = vsel %vm182, %v183, %v184
      %v188 = vsel %vm182, %v184, 0.0
      %v189 = vld [vmem:[%s1] sm:$0xff]
      %v190 = vld [vmem:[%s1 + $0x8] sm:$0xff]
      %v191 = vld [vmem:[%s1 + $0x10] sm:$0xff]
      %v192 = vld [vmem:[%s1 + $0x18] sm:$0xff]
      %v193 = vld [vmem:[%s1 + $0x20] sm:$0xff]
      %v194 = vld [vmem:[%s1 + $0x28] sm:$0xff]
      %v195 = vld [vmem:[%s1 + $0x30] sm:$0xff]
      %v196 = vld [vmem:[%s1 + $0x38] sm:$0xff]
      %v197 = vld [vmem:[%s1 + $0x40] sm:$0xff]
      %v198 = vld [vmem:[%s1 + $0x48] sm:$0xff]
      %v199 = vld [vmem:[%s1 + $0x50] sm:$0xff]
      %v200 = vld [vmem:[%s1 + $0x58] sm:$0xff]
      %v201 = vld [vmem:[%s1 + $0x60] sm:$0xff]
      %v202 = vld [vmem:[%s1 + $0x68] sm:$0xff]
      %v203 = vld [vmem:[%s1 + $0x70] sm:$0xff]
      %v204 = vld [vmem:[%s1 + $0x78] sm:$0xff]
      %s205 = scalar_lea.vmem %s1, 128
      %v206 = vld [vmem:[%s205] sm:$0xff]
      %v207 = vld [vmem:[%s205 + $0x8] sm:$0xff]
      %v208 = vld [vmem:[%s205 + $0x10] sm:$0xff]
      %v209 = vld [vmem:[%s205 + $0x18] sm:$0xff]
      %v210 = vld [vmem:[%s205 + $0x20] sm:$0xff]
      %v211 = vld [vmem:[%s205 + $0x28] sm:$0xff]
      %v212 = vld [vmem:[%s205 + $0x30] sm:$0xff]
      %v213 = vld [vmem:[%s205 + $0x38] sm:$0xff]
      %v214 = vld [vmem:[%s205 + $0x40] sm:$0xff]
      %v215 = vld [vmem:[%s205 + $0x48] sm:$0xff]
      %v216 = vld [vmem:[%s205 + $0x50] sm:$0xff]
      %v217 = vld [vmem:[%s205 + $0x58] sm:$0xff]
      %v218 = vld [vmem:[%s205 + $0x60] sm:$0xff]
      %v219 = vld [vmem:[%s205 + $0x68] sm:$0xff]
      %v220 = vld [vmem:[%s205 + $0x70] sm:$0xff]
      %v221 = vld [vmem:[%s205 + $0x78] sm:$0xff]
      %222 = vmatpush.msra.mxu0 %v221
      %223 = vmatpush.msra.mxu0 %v220
      %224 = vmatpush.msra.mxu0 %v219
      %225 = vmatpush.msra.mxu0 %v218
      %226 = vmatpush.msra.mxu0 %v217
      %227 = vmatpush.msra.mxu0 %v216
      %228 = vmatpush.msra.mxu0 %v215
      %229 = vmatpush.msra.mxu0 %v214
      %230 = vmatpush.msra.mxu0 %v213
      %231 = vmatpush.msra.mxu0 %v212
      %232 = vmatpush.msra.mxu0 %v211
      %233 = vmatpush.msra.mxu0 %v210
      %234 = vmatpush.msra.mxu0 %v209
      %235 = vmatpush.msra.mxu0 %v208
      %236 = vmatpush.msra.mxu0 %v207
      %237 = vmatpush.msra.mxu0 %v206
      %238 = vmatmul.f32.gmra.mxu0 %v171
      %v239 = vpop.f32.mrf.mxu0
      %v240 = vadd.f32 0.0, %v239
      %241 = vmatmul.f32.gmra.mxu0 %v172
      %v242 = vpop.f32.mrf.mxu0
      %v243 = vadd.f32 0.0, %v242
      %244 = vdwg.mxu0
      %245 = vmatpush.msra.mxu0 %v204
      %246 = vmatpush.msra.mxu0 %v203
      %247 = vmatpush.msra.mxu0 %v202
      %248 = vmatpush.msra.mxu0 %v201
      %249 = vmatpush.msra.mxu0 %v200
      %250 = vmatpush.msra.mxu0 %v199
      %251 = vmatpush.msra.mxu0 %v198
      %252 = vmatpush.msra.mxu0 %v197
      %253 = vmatpush.msra.mxu0 %v196
      %254 = vmatpush.msra.mxu0 %v195
      %255 = vmatpush.msra.mxu0 %v194
      %256 = vmatpush.msra.mxu0 %v193
      %257 = vmatpush.msra.mxu0 %v192
      %258 = vmatpush.msra.mxu0 %v191
      %259 = vmatpush.msra.mxu0 %v190
      %260 = vmatpush.msra.mxu0 %v189
      %261 = vmatmul.f32.gmra.mxu0 %v181
      %v262 = vpop.f32.mrf.mxu0
      %v263 = vadd.f32 %v240, %v262
      %264 = vmatmul.f32.gmra.mxu0 %v178
      %v265 = vpop.f32.mrf.mxu0
      %v266 = vadd.f32 %v243, %v265
      %267 = vdwg.mxu0
      %s268 = scalar_lea.vmem %s1, 256
      %v269 = vld [vmem:[%s268] sm:$0xff]
      %v270 = vld [vmem:[%s268 + $0x8] sm:$0xff]
      %v271 = vld [vmem:[%s268 + $0x10] sm:$0xff]
      %v272 = vld [vmem:[%s268 + $0x18] sm:$0xff]
      %v273 = vld [vmem:[%s268 + $0x20] sm:$0xff]
      %v274 = vld [vmem:[%s268 + $0x28] sm:$0xff]
      %v275 = vld [vmem:[%s268 + $0x30] sm:$0xff]
      %v276 = vld [vmem:[%s268 + $0x38] sm:$0xff]
      %v277 = vld [vmem:[%s268 + $0x40] sm:$0xff]
      %v278 = vld [vmem:[%s268 + $0x48] sm:$0xff]
      %v279 = vld [vmem:[%s268 + $0x50] sm:$0xff]
      %v280 = vld [vmem:[%s268 + $0x58] sm:$0xff]
      %v281 = vld [vmem:[%s268 + $0x60] sm:$0xff]
      %v282 = vld [vmem:[%s268 + $0x68] sm:$0xff]
      %v283 = vld [vmem:[%s268 + $0x70] sm:$0xff]
      %v284 = vld [vmem:[%s268 + $0x78] sm:$0xff]
      %285 = vmatpush.msra.mxu0 %v284
      %286 = vmatpush.msra.mxu0 %v283
      %287 = vmatpush.msra.mxu0 %v282
      %288 = vmatpush.msra.mxu0 %v281
      %289 = vmatpush.msra.mxu0 %v280
      %290 = vmatpush.msra.mxu0 %v279
      %291 = vmatpush.msra.mxu0 %v278
      %292 = vmatpush.msra.mxu0 %v277
      %293 = vmatpush.msra.mxu0 %v276
      %294 = vmatpush.msra.mxu0 %v275
      %295 = vmatpush.msra.mxu0 %v274
      %296 = vmatpush.msra.mxu0 %v273
      %297 = vmatpush.msra.mxu0 %v272
      %298 = vmatpush.msra.mxu0 %v271
      %299 = vmatpush.msra.mxu0 %v270
      %300 = vmatpush.msra.mxu0 %v269
      %301 = vmatmul.f32.gmra.mxu0 %v185
      %v302 = vpop.f32.mrf.mxu0
      %v303 = vadd.f32 0.0, %v302
      %304 = vmatmul.f32.gmra.mxu0 %v188
      %v305 = vpop.f32.mrf.mxu0
      %v306 = vadd.f32 0.0, %v305
      %307 = vdwg.mxu0
      %v308 = vadd.f32 %v263, %v303
      %v309 = vadd.f32 %v266, %v306
      %v310 = vld [vmem:[%s2] sm:$0x1]
      %v312 = vperm.slane %v310, 0
      %v314 = vadd.f32 %v308, %v312
      %v315 = vadd.f32 %v309, %v312
      %v316 = vmax.f32 %v314, 0.0
      %v317 = vmax.f32 %v315, 0.0
      %v320 = vrot.slane %v316, 7
      %v321 = vrot.slane %v317, 7
      %v322 = vsel %vm175, %v320, %v321
      %v325 = vsel %vm175, 0.0, %v320
      %v326 = vrot.slane %v316, 1
      %v327 = vrot.slane %v317, 1
      %v328 = vsel %vm182, %v326, %v327
      %v331 = vsel %vm182, %v327, 0.0
      %s332 = scalar_lea.vmem %s1, 384
      %v333 = vld [vmem:[%s332] sm:$0xff]
      %v334 = vld [vmem:[%s332 + $0x8] sm:$0xff]
      %v335 = vld [vmem:[%s332 + $0x10] sm:$0xff]
      %v336 = vld [vmem:[%s332 + $0x18] sm:$0xff]
      %v337 = vld [vmem:[%s332 + $0x20] sm:$0xff]
      %v338 = vld [vmem:[%s332 + $0x28] sm:$0xff]
      %v339 = vld [vmem:[%s332 + $0x30] sm:$0xff]
      %v340 = vld [vmem:[%s332 + $0x38] sm:$0xff]
      %v341 = vld [vmem:[%s332 + $0x40] sm:$0xff]
      %v342 = vld [vmem:[%s332 + $0x48] sm:$0xff]
      %v343 = vld [vmem:[%s332 + $0x50] sm:$0xff]
      %v344 = vld [vmem:[%s332 + $0x58] sm:$0xff]
      %v345 = vld [vmem:[%s332 + $0x60] sm:$0xff]
      %v346 = vld [vmem:[%s332 + $0x68] sm:$0xff]
      %v347 = vld [vmem:[%s332 + $0x70] sm:$0xff]
      %v348 = vld [vmem:[%s332 + $0x78] sm:$0xff]
      %s349 = scalar_lea.vmem %s1, 512
      %v350 = vld [vmem:[%s349] sm:$0xff]
      %v351 = vld [vmem:[%s349 + $0x8] sm:$0xff]
      %v352 = vld [vmem:[%s349 + $0x10] sm:$0xff]
      %v353 = vld [vmem:[%s349 + $0x18] sm:$0xff]
      %v354 = vld [vmem:[%s349 + $0x20] sm:$0xff]
      %v355 = vld [vmem:[%s349 + $0x28] sm:$0xff]
      %v356 = vld [vmem:[%s349 + $0x30] sm:$0xff]
      %v357 = vld [vmem:[%s349 + $0x38] sm:$0xff]
      %v358 = vld [vmem:[%s349 + $0x40] sm:$0xff]
      %v359 = vld [vmem:[%s349 + $0x48] sm:$0xff]
      %v360 = vld [vmem:[%s349 + $0x50] sm:$0xff]
      %v361 = vld [vmem:[%s349 + $0x58] sm:$0xff]
      %v362 = vld [vmem:[%s349 + $0x60] sm:$0xff]
      %v363 = vld [vmem:[%s349 + $0x68] sm:$0xff]
      %v364 = vld [vmem:[%s349 + $0x70] sm:$0xff]
      %v365 = vld [vmem:[%s349 + $0x78] sm:$0xff]
      %366 = vmatpush.msra.mxu0 %v365
      %367 = vmatpush.msra.mxu0 %v364
      %368 = vmatpush.msra.mxu0 %v363
      %369 = vmatpush.msra.mxu0 %v362
      %370 = vmatpush.msra.mxu0 %v361
      %371 = vmatpush.msra.mxu0 %v360
      %372 = vmatpush.msra.mxu0 %v359
      %373 = vmatpush.msra.mxu0 %v358
      %374 = vmatpush.msra.mxu0 %v357
      %375 = vmatpush.msra.mxu0 %v356
      %376 = vmatpush.msra.mxu0 %v355
      %377 = vmatpush.msra.mxu0 %v354
      %378 = vmatpush.msra.mxu0 %v353
      %379 = vmatpush.msra.mxu0 %v352
      %380 = vmatpush.msra.mxu0 %v351
      %381 = vmatpush.msra.mxu0 %v350
      %382 = vmatmul.f32.gmra.mxu0 %v316
      %v383 = vpop.f32.mrf.mxu0
      %v384 = vadd.f32 0.0, %v383
      %385 = vmatmul.f32.gmra.mxu0 %v317
      %v386 = vpop.f32.mrf.mxu0
      %v387 = vadd.f32 0.0, %v386
      %388 = vdwg.mxu0
      %389 = vmatpush.msra.mxu0 %v348
      %390 = vmatpush.msra.mxu0 %v347
      %391 = vmatpush.msra.mxu0 %v346
      %392 = vmatpush.msra.mxu0 %v345
      %393 = vmatpush.msra.mxu0 %v344
      %394 = vmatpush.msra.mxu0 %v343
      %395 = vmatpush.msra.mxu0 %v342
      %396 = vmatpush.msra.mxu0 %v341
      %397 = vmatpush.msra.mxu0 %v340
      %398 = vmatpush.msra.mxu0 %v339
      %399 = vmatpush.msra.mxu0 %v338
      %400 = vmatpush.msra.mxu0 %v337
      %401 = vmatpush.msra.mxu0 %v336
      %402 = vmatpush.msra.mxu0 %v335
      %403 = vmatpush.msra.mxu0 %v334
      %404 = vmatpush.msra.mxu0 %v333
      %405 = vmatmul.f32.gmra.mxu0 %v325
      %v406 = vpop.f32.mrf.mxu0
      %v407 = vadd.f32 %v384, %v406
      %408 = vmatmul.f32.gmra.mxu0 %v322
      %v409 = vpop.f32.mrf.mxu0
      %v410 = vadd.f32 %v387, %v409
      %411 = vdwg.mxu0
      %s412 = scalar_lea.vmem %s1, 640
      %v413 = vld [vmem:[%s412] sm:$0xff]
      %v414 = vld [vmem:[%s412 + $0x8] sm:$0xff]
      %v415 = vld [vmem:[%s412 + $0x10] sm:$0xff]
      %v416 = vld [vmem:[%s412 + $0x18] sm:$0xff]
      %v417 = vld [vmem:[%s412 + $0x20] sm:$0xff]
      %v418 = vld [vmem:[%s412 + $0x28] sm:$0xff]
      %v419 = vld [vmem:[%s412 + $0x30] sm:$0xff]
      %v420 = vld [vmem:[%s412 + $0x38] sm:$0xff]
      %v421 = vld [vmem:[%s412 + $0x40] sm:$0xff]
      %v422 = vld [vmem:[%s412 + $0x48] sm:$0xff]
      %v423 = vld [vmem:[%s412 + $0x50] sm:$0xff]
      %v424 = vld [vmem:[%s412 + $0x58] sm:$0xff]
      %v425 = vld [vmem:[%s412 + $0x60] sm:$0xff]
      %v426 = vld [vmem:[%s412 + $0x68] sm:$0xff]
      %v427 = vld [vmem:[%s412 + $0x70] sm:$0xff]
      %v428 = vld [vmem:[%s412 + $0x78] sm:$0xff]
      %429 = vmatpush.msra.mxu0 %v428
      %430 = vmatpush.msra.mxu0 %v427
      %431 = vmatpush.msra.mxu0 %v426
      %432 = vmatpush.msra.mxu0 %v425
      %433 = vmatpush.msra.mxu0 %v424
      %434 = vmatpush.msra.mxu0 %v423
      %435 = vmatpush.msra.mxu0 %v422
      %436 = vmatpush.msra.mxu0 %v421
      %437 = vmatpush.msra.mxu0 %v420
      %438 = vmatpush.msra.mxu0 %v419
      %439 = vmatpush.msra.mxu0 %v418
      %440 = vmatpush.msra.mxu0 %v417
      %441 = vmatpush.msra.mxu0 %v416
      %442 = vmatpush.msra.mxu0 %v415
      %443 = vmatpush.msra.mxu0 %v414
      %444 = vmatpush.msra.mxu0 %v413
      %445 = vmatmul.f32.gmra.mxu0 %v328
      %v446 = vpop.f32.mrf.mxu0
      %v447 = vadd.f32 0.0, %v446
      %448 = vmatmul.f32.gmra.mxu0 %v331
      %v449 = vpop.f32.mrf.mxu0
      %v450 = vadd.f32 0.0, %v449
      %451 = vdwg.mxu0
      %v452 = vadd.f32 %v407, %v447
      %v453 = vadd.f32 %v410, %v450
      %s454 = scalar_lea.vmem %s2, 1
      %v455 = vld [vmem:[%s454] sm:$0x1]
      %v457 = vperm.slane %v455, 0
      %v459 = vadd.f32 %v452, %v457
      %v460 = vadd.f32 %v453, %v457
      %v461 = vadd.f32 %v459, %v171
      %v462 = vadd.f32 %v460, %v172
      %v465 = vrot.slane %v461, 7
      %v466 = vrot.slane %v462, 7
      %v467 = vsel %vm175, %v465, %v466
      %v470 = vsel %vm175, 0.0, %v465
      %v471 = vrot.slane %v461, 1
      %v472 = vrot.slane %v462, 1
      %v473 = vsel %vm182, %v471, %v472
      %v476 = vsel %vm182, %v472, 0.0
      %s477 = scalar_lea.vmem %s1, 768
      %v478 = vld [vmem:[%s477] sm:$0xff]
      %v479 = vld [vmem:[%s477 + $0x8] sm:$0xff]
      %v480 = vld [vmem:[%s477 + $0x10] sm:$0xff]
      %v481 = vld [vmem:[%s477 + $0x18] sm:$0xff]
      %v482 = vld [vmem:[%s477 + $0x20] sm:$0xff]
      %v483 = vld [vmem:[%s477 + $0x28] sm:$0xff]
      %v484 = vld [vmem:[%s477 + $0x30] sm:$0xff]
      %v485 = vld [vmem:[%s477 + $0x38] sm:$0xff]
      %v486 = vld [vmem:[%s477 + $0x40] sm:$0xff]
      %v487 = vld [vmem:[%s477 + $0x48] sm:$0xff]
      %v488 = vld [vmem:[%s477 + $0x50] sm:$0xff]
      %v489 = vld [vmem:[%s477 + $0x58] sm:$0xff]
      %v490 = vld [vmem:[%s477 + $0x60] sm:$0xff]
      %v491 = vld [vmem:[%s477 + $0x68] sm:$0xff]
      %v492 = vld [vmem:[%s477 + $0x70] sm:$0xff]
      %v493 = vld [vmem:[%s477 + $0x78] sm:$0xff]
      %s494 = scalar_lea.vmem %s1, 896
      %v495 = vld [vmem:[%s494] sm:$0xff]
      %v496 = vld [vmem:[%s494 + $0x8] sm:$0xff]
      %v497 = vld [vmem:[%s494 + $0x10] sm:$0xff]
      %v498 = vld [vmem:[%s494 + $0x18] sm:$0xff]
      %v499 = vld [vmem:[%s494 + $0x20] sm:$0xff]
      %v500 = vld [vmem:[%s494 + $0x28] sm:$0xff]
      %v501 = vld [vmem:[%s494 + $0x30] sm:$0xff]
      %v502 = vld [vmem:[%s494 + $0x38] sm:$0xff]
      %v503 = vld [vmem:[%s494 + $0x40] sm:$0xff]
      %v504 = vld [vmem:[%s494 + $0x48] sm:$0xff]
      %v505 = vld [vmem:[%s494 + $0x50] sm:$0xff]
      %v506 = vld [vmem:[%s494 + $0x58] sm:$0xff]
      %v507 = vld [vmem:[%s494 + $0x60] sm:$0xff]
      %v508 = vld [vmem:[%s494 + $0x68] sm:$0xff]
      %v509 = vld [vmem:[%s494 + $0x70] sm:$0xff]
      %v510 = vld [vmem:[%s494 + $0x78] sm:$0xff]
      %511 = vmatpush.msra.mxu0 %v510
      %512 = vmatpush.msra.mxu0 %v509
      %513 = vmatpush.msra.mxu0 %v508
      %514 = vmatpush.msra.mxu0 %v507
      %515 = vmatpush.msra.mxu0 %v506
      %516 = vmatpush.msra.mxu0 %v505
      %517 = vmatpush.msra.mxu0 %v504
      %518 = vmatpush.msra.mxu0 %v503
      %519 = vmatpush.msra.mxu0 %v502
      %520 = vmatpush.msra.mxu0 %v501
      %521 = vmatpush.msra.mxu0 %v500
      %522 = vmatpush.msra.mxu0 %v499
      %523 = vmatpush.msra.mxu0 %v498
      %524 = vmatpush.msra.mxu0 %v497
      %525 = vmatpush.msra.mxu0 %v496
      %526 = vmatpush.msra.mxu0 %v495
      %527 = vmatmul.f32.gmra.mxu0 %v461
      %v528 = vpop.f32.mrf.mxu0
      %v529 = vadd.f32 0.0, %v528
      %530 = vmatmul.f32.gmra.mxu0 %v462
      %v531 = vpop.f32.mrf.mxu0
      %v532 = vadd.f32 0.0, %v531
      %533 = vdwg.mxu0
      %534 = vmatpush.msra.mxu0 %v493
      %535 = vmatpush.msra.mxu0 %v492
      %536 = vmatpush.msra.mxu0 %v491
      %537 = vmatpush.msra.mxu0 %v490
      %538 = vmatpush.msra.mxu0 %v489
      %539 = vmatpush.msra.mxu0 %v488
      %540 = vmatpush.msra.mxu0 %v487
      %541 = vmatpush.msra.mxu0 %v486
      %542 = vmatpush.msra.mxu0 %v485
      %543 = vmatpush.msra.mxu0 %v484
      %544 = vmatpush.msra.mxu0 %v483
      %545 = vmatpush.msra.mxu0 %v482
      %546 = vmatpush.msra.mxu0 %v481
      %547 = vmatpush.msra.mxu0 %v480
      %548 = vmatpush.msra.mxu0 %v479
      %549 = vmatpush.msra.mxu0 %v478
      %550 = vmatmul.f32.gmra.mxu0 %v470
      %v551 = vpop.f32.mrf.mxu0
      %v552 = vadd.f32 %v529, %v551
      %553 = vmatmul.f32.gmra.mxu0 %v467
      %v554 = vpop.f32.mrf.mxu0
      %v555 = vadd.f32 %v532, %v554
      %556 = vdwg.mxu0
      %s557 = scalar_lea.vmem %s1, 1024
      %v558 = vld [vmem:[%s557] sm:$0xff]
      %v559 = vld [vmem:[%s557 + $0x8] sm:$0xff]
      %v560 = vld [vmem:[%s557 + $0x10] sm:$0xff]
      %v561 = vld [vmem:[%s557 + $0x18] sm:$0xff]
      %v562 = vld [vmem:[%s557 + $0x20] sm:$0xff]
      %v563 = vld [vmem:[%s557 + $0x28] sm:$0xff]
      %v564 = vld [vmem:[%s557 + $0x30] sm:$0xff]
      %v565 = vld [vmem:[%s557 + $0x38] sm:$0xff]
      %v566 = vld [vmem:[%s557 + $0x40] sm:$0xff]
      %v567 = vld [vmem:[%s557 + $0x48] sm:$0xff]
      %v568 = vld [vmem:[%s557 + $0x50] sm:$0xff]
      %v569 = vld [vmem:[%s557 + $0x58] sm:$0xff]
      %v570 = vld [vmem:[%s557 + $0x60] sm:$0xff]
      %v571 = vld [vmem:[%s557 + $0x68] sm:$0xff]
      %v572 = vld [vmem:[%s557 + $0x70] sm:$0xff]
      %v573 = vld [vmem:[%s557 + $0x78] sm:$0xff]
      %574 = vmatpush.msra.mxu0 %v573
      %575 = vmatpush.msra.mxu0 %v572
      %576 = vmatpush.msra.mxu0 %v571
      %577 = vmatpush.msra.mxu0 %v570
      %578 = vmatpush.msra.mxu0 %v569
      %579 = vmatpush.msra.mxu0 %v568
      %580 = vmatpush.msra.mxu0 %v567
      %581 = vmatpush.msra.mxu0 %v566
      %582 = vmatpush.msra.mxu0 %v565
      %583 = vmatpush.msra.mxu0 %v564
      %584 = vmatpush.msra.mxu0 %v563
      %585 = vmatpush.msra.mxu0 %v562
      %586 = vmatpush.msra.mxu0 %v561
      %587 = vmatpush.msra.mxu0 %v560
      %588 = vmatpush.msra.mxu0 %v559
      %589 = vmatpush.msra.mxu0 %v558
      %590 = vmatmul.f32.gmra.mxu0 %v473
      %v591 = vpop.f32.mrf.mxu0
      %v592 = vadd.f32 0.0, %v591
      %593 = vmatmul.f32.gmra.mxu0 %v476
      %v594 = vpop.f32.mrf.mxu0
      %v595 = vadd.f32 0.0, %v594
      %596 = vdwg.mxu0
      %v597 = vadd.f32 %v552, %v592
      %v598 = vadd.f32 %v555, %v595
      %s599 = scalar_lea.vmem %s2, 2
      %v600 = vld [vmem:[%s599] sm:$0x1]
      %v602 = vperm.slane %v600, 0
      %v604 = vadd.f32 %v597, %v602
      %v605 = vadd.f32 %v598, %v602
      %v606 = vmax.f32 %v604, 0.0
      %v607 = vmax.f32 %v605, 0.0
      %v610 = vrot.slane %v606, 7
      %v611 = vrot.slane %v607, 7
      %v612 = vsel %vm175, %v610, %v611
      %v615 = vsel %vm175, 0.0, %v610
      %v616 = vrot.slane %v606, 1
      %v617 = vrot.slane %v607, 1
      %v618 = vsel %vm182, %v616, %v617
      %v621 = vsel %vm182, %v617, 0.0
      %s622 = scalar_lea.vmem %s1, 1152
      %v623 = vld [vmem:[%s622] sm:$0xff]
      %v624 = vld [vmem:[%s622 + $0x8] sm:$0xff]
      %v625 = vld [vmem:[%s622 + $0x10] sm:$0xff]
      %v626 = vld [vmem:[%s622 + $0x18] sm:$0xff]
      %v627 = vld [vmem:[%s622 + $0x20] sm:$0xff]
      %v628 = vld [vmem:[%s622 + $0x28] sm:$0xff]
      %v629 = vld [vmem:[%s622 + $0x30] sm:$0xff]
      %v630 = vld [vmem:[%s622 + $0x38] sm:$0xff]
      %v631 = vld [vmem:[%s622 + $0x40] sm:$0xff]
      %v632 = vld [vmem:[%s622 + $0x48] sm:$0xff]
      %v633 = vld [vmem:[%s622 + $0x50] sm:$0xff]
      %v634 = vld [vmem:[%s622 + $0x58] sm:$0xff]
      %v635 = vld [vmem:[%s622 + $0x60] sm:$0xff]
      %v636 = vld [vmem:[%s622 + $0x68] sm:$0xff]
      %v637 = vld [vmem:[%s622 + $0x70] sm:$0xff]
      %v638 = vld [vmem:[%s622 + $0x78] sm:$0xff]
      %s639 = scalar_lea.vmem %s1, 1280
      %v640 = vld [vmem:[%s639] sm:$0xff]
      %v641 = vld [vmem:[%s639 + $0x8] sm:$0xff]
      %v642 = vld [vmem:[%s639 + $0x10] sm:$0xff]
      %v643 = vld [vmem:[%s639 + $0x18] sm:$0xff]
      %v644 = vld [vmem:[%s639 + $0x20] sm:$0xff]
      %v645 = vld [vmem:[%s639 + $0x28] sm:$0xff]
      %v646 = vld [vmem:[%s639 + $0x30] sm:$0xff]
      %v647 = vld [vmem:[%s639 + $0x38] sm:$0xff]
      %v648 = vld [vmem:[%s639 + $0x40] sm:$0xff]
      %v649 = vld [vmem:[%s639 + $0x48] sm:$0xff]
      %v650 = vld [vmem:[%s639 + $0x50] sm:$0xff]
      %v651 = vld [vmem:[%s639 + $0x58] sm:$0xff]
      %v652 = vld [vmem:[%s639 + $0x60] sm:$0xff]
      %v653 = vld [vmem:[%s639 + $0x68] sm:$0xff]
      %v654 = vld [vmem:[%s639 + $0x70] sm:$0xff]
      %v655 = vld [vmem:[%s639 + $0x78] sm:$0xff]
      %656 = vmatpush.msra.mxu0 %v655
      %657 = vmatpush.msra.mxu0 %v654
      %658 = vmatpush.msra.mxu0 %v653
      %659 = vmatpush.msra.mxu0 %v652
      %660 = vmatpush.msra.mxu0 %v651
      %661 = vmatpush.msra.mxu0 %v650
      %662 = vmatpush.msra.mxu0 %v649
      %663 = vmatpush.msra.mxu0 %v648
      %664 = vmatpush.msra.mxu0 %v647
      %665 = vmatpush.msra.mxu0 %v646
      %666 = vmatpush.msra.mxu0 %v645
      %667 = vmatpush.msra.mxu0 %v644
      %668 = vmatpush.msra.mxu0 %v643
      %669 = vmatpush.msra.mxu0 %v642
      %670 = vmatpush.msra.mxu0 %v641
      %671 = vmatpush.msra.mxu0 %v640
      %672 = vmatmul.f32.gmra.mxu0 %v606
      %v673 = vpop.f32.mrf.mxu0
      %v674 = vadd.f32 0.0, %v673
      %675 = vmatmul.f32.gmra.mxu0 %v607
      %v676 = vpop.f32.mrf.mxu0
      %v677 = vadd.f32 0.0, %v676
      %678 = vdwg.mxu0
      %679 = vmatpush.msra.mxu0 %v638
      %680 = vmatpush.msra.mxu0 %v637
      %681 = vmatpush.msra.mxu0 %v636
      %682 = vmatpush.msra.mxu0 %v635
      %683 = vmatpush.msra.mxu0 %v634
      %684 = vmatpush.msra.mxu0 %v633
      %685 = vmatpush.msra.mxu0 %v632
      %686 = vmatpush.msra.mxu0 %v631
      %687 = vmatpush.msra.mxu0 %v630
      %688 = vmatpush.msra.mxu0 %v629
      %689 = vmatpush.msra.mxu0 %v628
      %690 = vmatpush.msra.mxu0 %v627
      %691 = vmatpush.msra.mxu0 %v626
      %692 = vmatpush.msra.mxu0 %v625
      %693 = vmatpush.msra.mxu0 %v624
      %694 = vmatpush.msra.mxu0 %v623
      %695 = vmatmul.f32.gmra.mxu0 %v615
      %v696 = vpop.f32.mrf.mxu0
      %v697 = vadd.f32 %v674, %v696
      %698 = vmatmul.f32.gmra.mxu0 %v612
      %v699 = vpop.f32.mrf.mxu0
      %v700 = vadd.f32 %v677, %v699
      %701 = vdwg.mxu0
      %s702 = scalar_lea.vmem %s1, 1408
      %v703 = vld [vmem:[%s702] sm:$0xff]
      %v704 = vld [vmem:[%s702 + $0x8] sm:$0xff]
      %v705 = vld [vmem:[%s702 + $0x10] sm:$0xff]
      %v706 = vld [vmem:[%s702 + $0x18] sm:$0xff]
      %v707 = vld [vmem:[%s702 + $0x20] sm:$0xff]
      %v708 = vld [vmem:[%s702 + $0x28] sm:$0xff]
      %v709 = vld [vmem:[%s702 + $0x30] sm:$0xff]
      %v710 = vld [vmem:[%s702 + $0x38] sm:$0xff]
      %v711 = vld [vmem:[%s702 + $0x40] sm:$0xff]
      %v712 = vld [vmem:[%s702 + $0x48] sm:$0xff]
      %v713 = vld [vmem:[%s702 + $0x50] sm:$0xff]
      %v714 = vld [vmem:[%s702 + $0x58] sm:$0xff]
      %v715 = vld [vmem:[%s702 + $0x60] sm:$0xff]
      %v716 = vld [vmem:[%s702 + $0x68] sm:$0xff]
      %v717 = vld [vmem:[%s702 + $0x70] sm:$0xff]
      %v718 = vld [vmem:[%s702 + $0x78] sm:$0xff]
      %719 = vmatpush.msra.mxu0 %v718
      %720 = vmatpush.msra.mxu0 %v717
      %721 = vmatpush.msra.mxu0 %v716
      %722 = vmatpush.msra.mxu0 %v715
      %723 = vmatpush.msra.mxu0 %v714
      %724 = vmatpush.msra.mxu0 %v713
      %725 = vmatpush.msra.mxu0 %v712
      %726 = vmatpush.msra.mxu0 %v711
      %727 = vmatpush.msra.mxu0 %v710
      %728 = vmatpush.msra.mxu0 %v709
      %729 = vmatpush.msra.mxu0 %v708
      %730 = vmatpush.msra.mxu0 %v707
      %731 = vmatpush.msra.mxu0 %v706
      %732 = vmatpush.msra.mxu0 %v705
      %733 = vmatpush.msra.mxu0 %v704
      %734 = vmatpush.msra.mxu0 %v703
      %735 = vmatmul.f32.gmra.mxu0 %v618
      %v736 = vpop.f32.mrf.mxu0
      %v737 = vadd.f32 0.0, %v736
      %738 = vmatmul.f32.gmra.mxu0 %v621
      %v739 = vpop.f32.mrf.mxu0
      %v740 = vadd.f32 0.0, %v739
      %741 = vdwg.mxu0
      %v742 = vadd.f32 %v697, %v737
      %v743 = vadd.f32 %v700, %v740
      %s744 = scalar_lea.vmem %s2, 3
      %v745 = vld [vmem:[%s744] sm:$0x1]
      %v747 = vperm.slane %v745, 0
      %v749 = vadd.f32 %v742, %v747
      %v750 = vadd.f32 %v743, %v747
      %v751 = vadd.f32 %v749, %v461
      %v752 = vadd.f32 %v750, %v462
      %753 = vst [vmem:[%s170] sm:$0xff] %v751
      %754 = vst [vmem:[%s170 + $0x8] sm:$0xff] %v752
      %p755 = scmp.lt.s32.totalorder %s14, 1
      %s756 = scalar_select %p755, %s14, 1
      %s757 = smul.addr %s756, 2
      %s758 = smul.addr %s757, 8
      %s759 = scalar_lea.vmem %s3, %s758
      // Predicated region
      $region33: #{eblock_forward.1} parent=31 // pred_check
        %p760 = pneg %p100
      $region34: #{eblock_forward.1} parent=31 // pred_check_branch
        %762 = sbr.rel (%p760) target = $region36
      $region35: #{eblock_forward.1} parent=31 // pred_region
        _
      $region36: #{eblock_forward.1} parent=31 // pred_fallthru
        _
    $region32: #{eblock_forward.1} parent=5 // pred_fallthru
      _
    %p763 = scmp.le.s32.totalorder 2, %s9
    // Predicated region
    $region37: #{eblock_forward.1} parent=5 // pred_check
      %p764 = pneg %p763
    $region38: #{eblock_forward.1} parent=5 // pred_check_branch
      %766 = sbr.rel (%p764) target = $region40
    $region39: #{eblock_forward.1} parent=5 // pred_region
      %s767 = ssub.s32 %s9, 2
      // Predicated region
      $region41: #{eblock_forward.1} parent=39 // pred_check
        %p768 = pneg %p106
      $region42: #{eblock_forward.1} parent=39 // pred_check_branch
        %770 = sbr.rel (%p768) target = $region44
      $region43: #{eblock_forward.1} parent=39 // pred_region
        %p771 = scmp.lt.s32.totalorder %s15, 1
        %s772 = scalar_select %p771, %s15, 1
        %s773 = smul.addr %s772, 2
        %s774 = smul.addr %s773, 8
        %s775 = scalar_lea.vmem %s3, %s774
      $region44: #{eblock_forward.1} parent=39 // pred_fallthru
        _
    $region40: #{eblock_forward.1} parent=5 // pred_fallthru
      _
  $region6: #{eblock_forward.1} parent=0 // loop_footer
    %s13 = sadd.s32 1, %s9
  $region7: #{eblock_forward.1} parent=0 // loop_footer_branch
    %8 = sbr.rel target = $region3
  $region8: #{eblock_forward.1} parent=0 // loop_exit
    _

</llo_original>
